<compile_context>
chip_gen: v6e
topology: v6e:2x2x1
jax: 0.10.0
libtpu: 0.0.40
codegen_flags: <defaults>
</compile_context>

<pallas_src>
import jax
import jax.numpy as jnp
from jax.experimental import pallas as pl
from jax.experimental.pallas import tpu as pltpu


NEG_SLOPE = 0.01            # torch.nn.LeakyReLU default negative_slope
DEFAULT_TILE_N = 8192       # lane-axis (batch) tile; multiple of 128


def _leaky_relu(z):
    # max(z, a*z) == where(z > 0, z, a*z) for 0 < a < 1; one fewer VPU op.
    return jnp.maximum(z, NEG_SLOPE * z)


def z_network_kernel(hT_ref, w1t_ref, b1t_ref, w2t_ref, b2t_ref,
                     w3t_ref, b3t_ref, oT_ref):
    """out^T = W3^T @ lrelu(W2^T @ lrelu(W1^T @ h^T + b1^T) + b2^T) + b3^T.

    All streamed operands are (features, tile_n): batch on lanes, lane-dense.
    """
    h = hT_ref[...]
    z1 = jnp.dot(w1t_ref[...], h, preferred_element_type=jnp.float32) + b1t_ref[...]
    a1 = _leaky_relu(z1)
    z2 = jnp.dot(w2t_ref[...], a1.astype(w2t_ref.dtype),
                 preferred_element_type=jnp.float32) + b2t_ref[...]
    a2 = _leaky_relu(z2)
    z3 = jnp.dot(w3t_ref[...], a2.astype(w3t_ref.dtype),
                 preferred_element_type=jnp.float32) + b3t_ref[...]
    oT_ref[...] = z3.astype(oT_ref.dtype)


def _round_up(a, m):
    return ((a + m - 1) // m) * m


def _pick_tile_n(n):
    if n <= 256:
        return n                                    # full-extent block, tiny batch
    # At least 2 grid steps (v7x megacore + DMA/compute overlap), lane-aligned tile.
    return min(DEFAULT_TILE_N, _round_up(pl.cdiv(n, 2), 128))


def z_network_forward(r, s, x, params, tile_n=None, compute_dtype=None):
    """Pallas implementation of Z_Network.forward(r, s, x).

    r: (N, dimension_r); s: scalar () or per-row (N,)/(N, 1); x: (N, dimension_state).
    params: w1,b1,w2,b2,w3,b3 with weights stored (in_dim, out_dim); w1's rows are
            ordered [r-rows, s-row, x-rows], matching torch.cat((r, s_, x), dim=1).
    """
    r = jnp.asarray(r)
    x = jnp.asarray(x)
    s = jnp.asarray(s)
    N, dr = r.shape
    dx = x.shape[1]
    f32 = jnp.float32

    w1, b1 = params["w1"], params["b1"]
    w2, b2 = params["w2"], params["b2"]
    w3, b3 = params["w3"], params["b3"]
    d_out = w3.shape[1]
    out_dtype = x.dtype

    if s.ndim == 0:
        # Fold scalar s into the first-layer bias and drop w1's s-row; stream
        # concat(r, x)^T -> one fused layer-1 matmul with K = dr + dx.
        b1_eff = b1.astype(f32) + s.astype(f32) * w1[dr:dr + 1].astype(f32)
        w1_eff = jnp.concatenate([w1[:dr], w1[dr + 1:]], axis=0)      # (dr+dx, L1)
        hT = jnp.concatenate([r.T, x.T], axis=0)                      # (dr+dx, N)
    else:
        # Per-row s: fold the s column into the streamed features so its
        # contribution rides the layer-1 MXU matmul (no extra 1-lane DMA stream).
        b1_eff = b1.astype(f32)
        w1_eff = w1                                                   # (dr+1+dx, L1)
        s_row = jnp.reshape(s, (1, N)).astype(f32)                    # keep s in f32
        hT = jnp.concatenate(
            [r.T.astype(f32), s_row, x.T.astype(f32)], axis=0)        # (dr+1+dx, N)

    stream_dt = compute_dtype if compute_dtype is not None else hT.dtype
    hT = hT.astype(stream_dt)

    # Transposed, VMEM-resident weights (y^T = W^T @ x^T); biases as column vectors.
    w1t = w1_eff.T.astype(stream_dt)       # (L1, K)
    w2t = w2.T.astype(stream_dt)           # (L2, L1)
    w3t = w3.T.astype(stream_dt)           # (d_out, L2)
    b1t = b1_eff.T.astype(f32)             # (L1, 1)
    b2t = b2.T.astype(f32)                 # (L2, 1)
    b3t = b3.T.astype(f32)                 # (d_out, 1)

    K = hT.shape[0]
    if tile_n is None:
        tile_n = _pick_tile_n(N)
    grid = (pl.cdiv(N, tile_n),)

    def stream_spec(rows):                 # batch-(lane-)tiled operands
        return pl.BlockSpec((rows, tile_n), lambda i: (0, i))

    def const_spec(a):                     # VMEM-resident weights / biases
        return pl.BlockSpec(a.shape, lambda i: (0, 0))

    outT = pl.pallas_call(
        z_network_kernel,
        out_shape=jax.ShapeDtypeStruct((d_out, N), out_dtype),
        grid=grid,
        in_specs=[
            stream_spec(K),
            const_spec(w1t), const_spec(b1t),
            const_spec(w2t), const_spec(b2t),
            const_spec(w3t), const_spec(b3t),
        ],
        out_specs=stream_spec(d_out),
        compiler_params=pltpu.CompilerParams(
            dimension_semantics=("parallel",),     # split batch across TCs (v7x)
            vmem_limit_bytes=32 * 1024 * 1024,     # lane-dense layout: few MiB used
        ),
    )(hT, w1t, b1t, w2t, b2t, w3t, b3t)

    return outT.T                                  # back to module layout (N, d_out)


def init_params(key, dimension_r, dimension_state, layers):
    """Deterministic init mimicking torch.nn.Linear (uniform +/- 1/sqrt(fan_in))."""
    input_dim = dimension_r + dimension_state + 1
    widths = list(layers) + [dimension_state]
    params = {}
    prev = input_dim
    for i, w_out in enumerate(widths, start=1):
        key, kw, kb = jax.random.split(key, 3)
        bound = 1.0 / jnp.sqrt(prev)
        params[f"w{i}"] = jax.random.uniform(
            kw, (prev, w_out), jnp.float32, -bound, bound)
        params[f"b{i}"] = jax.random.uniform(
            kb, (1, w_out), jnp.float32, -bound, bound)
        prev = w_out
    return params


def reference_forward(r, s, x, params):
    """Pure-JAX reference of the original module semantics."""
    N = x.shape[0]
    s = jnp.asarray(s)
    s_ = jnp.full((N, 1), s, dtype=jnp.float32) if s.ndim == 0 else s.reshape(N, 1)
    h = jnp.concatenate((r, s_, x), axis=1)
    z = h
    z = _leaky_relu(z @ params["w1"] + params["b1"])
    z = _leaky_relu(z @ params["w2"] + params["b2"])
    z = z @ params["w3"] + params["b3"]
    return z


if __name__ == "__main__":
    dimension_r = 4
    dimension_state = 4
    config = {"layers": [32, 32]}

    key = jax.random.PRNGKey(0)
    key, kr, kx, ks, kp = jax.random.split(key, 5)
    params = init_params(kp, dimension_r, dimension_state, config["layers"])

    # --- small primary example: scalar time s (main module usage) ---
    N = 8
    r = jax.random.normal(kr, (N, dimension_r), jnp.float32)
    x = jax.random.normal(kx, (N, dimension_state), jnp.float32)
    s = jax.random.uniform(ks, (), jnp.float32)

    out = jax.block_until_ready(z_network_forward(r, s, x, params))
    ref = reference_forward(r, s, x, params)
    assert out.shape == (N, dimension_state)
    assert jnp.allclose(out, ref, atol=1e-5, rtol=1e-5), "scalar-s mismatch"

    # --- per-row time s (N, 1) path (s folded into the streamed features) ---
    key, ks2 = jax.random.split(key)
    s_vec = jax.random.uniform(ks2, (N, 1), jnp.float32)
    out_v = jax.block_until_ready(z_network_forward(r, s_vec, x, params))
    ref_v = reference_forward(r, s_vec, x, params)
    assert jnp.allclose(out_v, ref_v, atol=1e-5, rtol=1e-5), "vector-s mismatch"

    # --- exercise the batch grid: multiple lane tiles + partial trailing block ---
    key, kr2, kx2 = jax.random.split(key, 3)
    N2 = 300
    r2 = jax.random.normal(kr2, (N2, dimension_r), jnp.float32)
    x2 = jax.random.normal(kx2, (N2, dimension_state), jnp.float32)
    out2 = jax.block_until_ready(z_network_forward(r2, s, x2, params, tile_n=128))
    ref2 = reference_forward(r2, s, x2, params)
    assert out2.shape == (N2, dimension_state)
    assert jnp.allclose(out2, ref2, atol=1e-5, rtol=1e-5), "tiled mismatch"

    # --- default tile picker: >=2 grid steps, lane-aligned tile ---
    key, kr3, kx3 = jax.random.split(key, 3)
    N3 = 1024
    r3 = jax.random.normal(kr3, (N3, dimension_r), jnp.float32)
    x3 = jax.random.normal(kx3, (N3, dimension_state), jnp.float32)
    out3 = jax.block_until_ready(z_network_forward(r3, s, x3, params))
    ref3 = reference_forward(r3, s, x3, params)
    assert jnp.allclose(out3, ref3, atol=1e-5, rtol=1e-5), "default-tile mismatch"

    print("KERNEL_OK")
</pallas_src>

<mosaic_0001>
module attributes {stable_mosaic.version = 11 : i64} {
  func.func @z_network_kernel(%arg0: i32, %arg1: memref<8x8xf32, #tpu.memory_space<vmem>>, %arg2: memref<32x8xf32, #tpu.memory_space<vmem>>, %arg3: memref<32x1xf32, #tpu.memory_space<vmem>>, %arg4: memref<32x32xf32, #tpu.memory_space<vmem>>, %arg5: memref<32x1xf32, #tpu.memory_space<vmem>>, %arg6: memref<4x32xf32, #tpu.memory_space<vmem>>, %arg7: memref<4x1xf32, #tpu.memory_space<vmem>>, %arg8: memref<4x8xf32, #tpu.memory_space<vmem>>) attributes {dimension_semantics = [#tpu.dimension_semantics<parallel>], iteration_bounds = array<i64: 1>, scalar_prefetch = 0 : i64, scratch_operands = 0 : i64, tpu.core_type = #tpu.core_type<tc>, window_params = [{transform_indices = @transform_0, window_bounds = array<i64: 8, 8>}, {pipeline_mode = #tpu.pipeline_mode<synchronous>, transform_indices = @transform_1, window_bounds = array<i64: 32, 8>}, {pipeline_mode = #tpu.pipeline_mode<synchronous>, transform_indices = @transform_2, window_bounds = array<i64: 32, 1>}, {pipeline_mode = #tpu.pipeline_mode<synchronous>, transform_indices = @transform_3, window_bounds = array<i64: 32, 32>}, {pipeline_mode = #tpu.pipeline_mode<synchronous>, transform_indices = @transform_4, window_bounds = array<i64: 32, 1>}, {pipeline_mode = #tpu.pipeline_mode<synchronous>, transform_indices = @transform_5, window_bounds = array<i64: 4, 32>}, {pipeline_mode = #tpu.pipeline_mode<synchronous>, transform_indices = @transform_6, window_bounds = array<i64: 4, 1>}, {transform_indices = @transform_7, window_bounds = array<i64: 4, 8>}]} {
    %c0 = arith.constant 0 : index
    %c0_0 = arith.constant 0 : index
    %0 = vector.load %arg1[%c0, %c0_0] : memref<8x8xf32, #tpu.memory_space<vmem>>, vector<8x8xf32>
    %c0_1 = arith.constant 0 : index
    %c0_2 = arith.constant 0 : index
    %1 = vector.load %arg2[%c0_1, %c0_2] : memref<32x8xf32, #tpu.memory_space<vmem>>, vector<32x8xf32>
    %cst = arith.constant dense<0.000000e+00> : vector<32x8xf32>
    %2 = tpu.matmul %1, %0, %cst {dimension_numbers = #tpu.dot_dimension_numbers<[1], [0], [0], [1], [0, 0, 1, 1], [], []>} : vector<32x8xf32>, vector<8x8xf32>, vector<32x8xf32> -> vector<32x8xf32>
    %c0_3 = arith.constant 0 : index
    %c0_4 = arith.constant 0 : index
    %3 = vector.load %arg3[%c0_3, %c0_4] : memref<32x1xf32, #tpu.memory_space<vmem>>, vector<32x1xf32>
    %4 = vector.broadcast %3 : vector<32x1xf32> to vector<32x8xf32>
    %5 = arith.addf %2, %4 : vector<32x8xf32>
    %cst_5 = arith.constant 0.00999999977 : f32
    %6 = vector.broadcast %cst_5 : f32 to vector<32x8xf32>
    %7 = arith.mulf %6, %5 : vector<32x8xf32>
    %8 = arith.maximumf %5, %7 : vector<32x8xf32>
    %c0_6 = arith.constant 0 : index
    %c0_7 = arith.constant 0 : index
    %9 = vector.load %arg4[%c0_6, %c0_7] : memref<32x32xf32, #tpu.memory_space<vmem>>, vector<32x32xf32>
    %cst_8 = arith.constant dense<0.000000e+00> : vector<32x8xf32>
    %10 = tpu.matmul %9, %8, %cst_8 {dimension_numbers = #tpu.dot_dimension_numbers<[1], [0], [0], [1], [0, 0, 1, 1], [], []>} : vector<32x32xf32>, vector<32x8xf32>, vector<32x8xf32> -> vector<32x8xf32>
    %c0_9 = arith.constant 0 : index
    %c0_10 = arith.constant 0 : index
    %11 = vector.load %arg5[%c0_9, %c0_10] : memref<32x1xf32, #tpu.memory_space<vmem>>, vector<32x1xf32>
    %12 = vector.broadcast %11 : vector<32x1xf32> to vector<32x8xf32>
    %13 = arith.addf %10, %12 : vector<32x8xf32>
    %cst_11 = arith.constant 0.00999999977 : f32
    %14 = vector.broadcast %cst_11 : f32 to vector<32x8xf32>
    %15 = arith.mulf %14, %13 : vector<32x8xf32>
    %16 = arith.maximumf %13, %15 : vector<32x8xf32>
    %c0_12 = arith.constant 0 : index
    %c0_13 = arith.constant 0 : index
    %17 = vector.load %arg6[%c0_12, %c0_13] : memref<4x32xf32, #tpu.memory_space<vmem>>, vector<4x32xf32>
    %cst_14 = arith.constant dense<0.000000e+00> : vector<4x8xf32>
    %18 = tpu.matmul %17, %16, %cst_14 {dimension_numbers = #tpu.dot_dimension_numbers<[1], [0], [0], [1], [0, 0, 1, 1], [], []>} : vector<4x32xf32>, vector<32x8xf32>, vector<4x8xf32> -> vector<4x8xf32>
    %c0_15 = arith.constant 0 : index
    %c0_16 = arith.constant 0 : index
    %19 = vector.load %arg7[%c0_15, %c0_16] : memref<4x1xf32, #tpu.memory_space<vmem>>, vector<4x1xf32>
    %20 = vector.broadcast %19 : vector<4x1xf32> to vector<4x8xf32>
    %21 = arith.addf %18, %20 : vector<4x8xf32>
    %c0_17 = arith.constant 0 : index
    %c0_18 = arith.constant 0 : index
    %22 = vector.load %arg8[%c0_17, %c0_18] : memref<4x8xf32, #tpu.memory_space<vmem>>, vector<4x8xf32>
    tpu.vector_store %arg8[%c0_17, %c0_18], %21 {strides = array<i32>} : memref<4x8xf32, #tpu.memory_space<vmem>>, vector<4x8xf32>,
    return
  }
  func.func @transform_0(%arg0: i32) -> (i32, i32) {
    %c0_i32 = arith.constant 0 : i32
    %c0_i32_0 = arith.constant 0 : i32
    return %c0_i32, %arg0 : i32, i32
  }
  func.func @transform_1(%arg0: i32) -> (i32, i32) {
    %c0_i32 = arith.constant 0 : i32
    %c0_i32_0 = arith.constant 0 : i32
    %c0_i32_1 = arith.constant 0 : i32
    return %c0_i32, %c0_i32_0 : i32, i32
  }
  func.func @transform_2(%arg0: i32) -> (i32, i32) {
    %c0_i32 = arith.constant 0 : i32
    %c0_i32_0 = arith.constant 0 : i32
    %c0_i32_1 = arith.constant 0 : i32
    return %c0_i32, %c0_i32_0 : i32, i32
  }
  func.func @transform_3(%arg0: i32) -> (i32, i32) {
    %c0_i32 = arith.constant 0 : i32
    %c0_i32_0 = arith.constant 0 : i32
    %c0_i32_1 = arith.constant 0 : i32
    return %c0_i32, %c0_i32_0 : i32, i32
  }
  func.func @transform_4(%arg0: i32) -> (i32, i32) {
    %c0_i32 = arith.constant 0 : i32
    %c0_i32_0 = arith.constant 0 : i32
    %c0_i32_1 = arith.constant 0 : i32
    return %c0_i32, %c0_i32_0 : i32, i32
  }
  func.func @transform_5(%arg0: i32) -> (i32, i32) {
    %c0_i32 = arith.constant 0 : i32
    %c0_i32_0 = arith.constant 0 : i32
    %c0_i32_1 = arith.constant 0 : i32
    return %c0_i32, %c0_i32_0 : i32, i32
  }
  func.func @transform_6(%arg0: i32) -> (i32, i32) {
    %c0_i32 = arith.constant 0 : i32
    %c0_i32_0 = arith.constant 0 : i32
    %c0_i32_1 = arith.constant 0 : i32
    return %c0_i32, %c0_i32_0 : i32, i32
  }
  func.func @transform_7(%arg0: i32) -> (i32, i32) {
    %c0_i32 = arith.constant 0 : i32
    %c0_i32_0 = arith.constant 0 : i32
    return %c0_i32, %arg0 : i32, i32
  }
}

</mosaic_0001>

<llo_original>
// kernel: tpu_custom_call.1
$region0: #{tpu_custom_call.1}
  #allocation0 [shape = 'u32[]', space=smem, size = 0x4, offset = 0x4, fixed_abs, tag = 'smem constant byte address 0x4 - core index']
  #allocation1 [shape = 'u32[144,128]{1,0:T(1,128)}', space=vmem, size = 0x12000, scoped, tag = 'internal scratch']
  %s0 = inlined_call_operand.vmem [shape: f32[8,8], index: 0, kind: input, shape index: {}]
  %s1 = inlined_call_operand.vmem [shape: f32[32,8], index: 1, kind: input, shape index: {}]
  %s2 = inlined_call_operand.vmem [shape: f32[32,1], index: 2, kind: input, shape index: {}]
  %s3 = inlined_call_operand.vmem [shape: f32[32,32], index: 3, kind: input, shape index: {}]
  %s4 = inlined_call_operand.vmem [shape: f32[32,1], index: 4, kind: input, shape index: {}]
  %s5 = inlined_call_operand.vmem [shape: f32[4,32], index: 5, kind: input, shape index: {}]
  %s6 = inlined_call_operand.vmem [shape: f32[4,1], index: 6, kind: input, shape index: {}]
  %s7 = inlined_call_operand.hbm [shape: f32[4,8], index: 7, kind: output, shape index: {}]
  %s8 = sld [smem:[#allocation0]]
  $region38: #{tpu_custom_call.1} parent=0
    _
  %s10 = ssub.s32 1, %s8
  %s11 = scalar_select 0, %s10, %s8
  $region1: #{tpu_custom_call.1} parent=0
    #allocation2 [shape = 'u8[2048]{0}', space=vmem, size = 0x800, scoped, tag = 'output window, operand 0, single buffered']
    #allocation3 [shape = 's32[1]{0}', space=sflag, size = 0x4, scoped, tag = 'scoped memory for tpu_custom_call.1']
    %12 = vsyncpa [#allocation3], 0
    // Predicated region
    $region2: #{tpu_custom_call.1} parent=1 // pred_check
      _
    $region3: #{tpu_custom_call.1} parent=1 // pred_check_branch
      %14 = sbr.rel (0) target = $region5
    $region4: #{tpu_custom_call.1} parent=1 // pred_region
      _
    $region5: #{tpu_custom_call.1} parent=1 // pred_fallthru
      _
    // Predicated region
    $region6: #{tpu_custom_call.1} parent=1 // pred_check
      _
    $region7: #{tpu_custom_call.1} parent=1 // pred_check_branch
      %16 = sbr.rel (0) target = $region9
    $region8: #{tpu_custom_call.1} parent=1 // pred_region
      _
    $region9: #{tpu_custom_call.1} parent=1 // pred_fallthru
      _
    // Predicated region
    $region10: #{tpu_custom_call.1} parent=1 // pred_check
      _
    $region11: #{tpu_custom_call.1} parent=1 // pred_check_branch
      %18 = sbr.rel (0) target = $region13
    $region12: #{tpu_custom_call.1} parent=1 // pred_region
      _
    $region13: #{tpu_custom_call.1} parent=1 // pred_fallthru
      _
    // Predicated region
    $region14: #{tpu_custom_call.1} parent=1 // pred_check
      _
    $region15: #{tpu_custom_call.1} parent=1 // pred_check_branch
      %20 = sbr.rel (0) target = $region17
    $region16: #{tpu_custom_call.1} parent=1 // pred_region
      _
    $region17: #{tpu_custom_call.1} parent=1 // pred_fallthru
      _
    // Predicated region
    $region18: #{tpu_custom_call.1} parent=1 // pred_check
      _
    $region19: #{tpu_custom_call.1} parent=1 // pred_check_branch
      %22 = sbr.rel (0) target = $region21
    $region20: #{tpu_custom_call.1} parent=1 // pred_region
      _
    $region21: #{tpu_custom_call.1} parent=1 // pred_fallthru
      _
    // Predicated region
    $region22: #{tpu_custom_call.1} parent=1 // pred_check
      _
    $region23: #{tpu_custom_call.1} parent=1 // pred_check_branch
      %24 = sbr.rel (0) target = $region25
    $region24: #{tpu_custom_call.1} parent=1 // pred_region
      _
    $region25: #{tpu_custom_call.1} parent=1 // pred_fallthru
      _
    // Predicated region
    $region26: #{tpu_custom_call.1} parent=1 // pred_check
      _
    $region27: #{tpu_custom_call.1} parent=1 // pred_check_branch
      %26 = sbr.rel (0) target = $region29
    $region28: #{tpu_custom_call.1} parent=1 // pred_region
      _
    $region29: #{tpu_custom_call.1} parent=1 // pred_fallthru
      _
    %v27 = vld [vmem:[%s0] sm:$0xff]
    %v28 = vld [vmem:[%s1] sm:$0xff]
    %v29 = vld [vmem:[%s1 + $0x8] sm:$0xff]
    %v30 = vld [vmem:[%s1 + $0x10] sm:$0xff]
    %v31 = vld [vmem:[%s1 + $0x18] sm:$0xff]
    %v32 = vld [vmem:[%s2] sm:$0xff]
    %v33 = vld [vmem:[%s2 + $0x8] sm:$0xff]
    %v34 = vld [vmem:[%s2 + $0x10] sm:$0xff]
    %v35 = vld [vmem:[%s2 + $0x18] sm:$0xff]
    %37 = vset.pattern.permute.xlu0 0
    %38 = vperm.xlu0 %37, %v32
    %v39 = vpop.permute.xlu0 %38
    %42 = vset.pattern.permute.xlu0 0
    %43 = vperm.xlu0 %42, %v33
    %v44 = vpop.permute.xlu0 %43
    %47 = vset.pattern.permute.xlu0 0
    %48 = vperm.xlu0 %47, %v34
    %v49 = vpop.permute.xlu0 %48
    %52 = vset.pattern.permute.xlu0 0
    %53 = vperm.xlu0 %52, %v35
    %v54 = vpop.permute.xlu0 %53
    %vm56 = vcmask 64512
    %v58 = vsel %vm56, %v28, 0
    %v61 = vsel %vm56, %v29, 0
    %v64 = vsel %vm56, %v30, 0
    %v67 = vsel %vm56, %v31, 0
    %69 = vmatprep.subr.mxu0 0.0
    %70 = vmatpush1.msra.mxu0 0.0
    %71 = vmatprep.subr.mxu0 0.0
    %72 = vmatpush1.msra.mxu0 0.0
    %73 = vmatprep.subr.mxu0 0.0
    %74 = vmatpush1.msra.mxu0 0.0
    %75 = vmatprep.subr.mxu0 0.0
    %76 = vmatpush1.msra.mxu0 0.0
    %77 = vmatprep.subr.mxu0 0.0
    %78 = vmatpush1.msra.mxu0 0.0
    %79 = vmatprep.subr.mxu0 0.0
    %80 = vmatpush1.msra.mxu0 0.0
    %81 = vmatprep.subr.mxu0 0.0
    %82 = vmatpush1.msra.mxu0 0.0
    %83 = vmatprep.subr.mxu0 0.0
    %84 = vmatpush1.msra.mxu0 0.0
    %85 = vmatprep.subr.mxu0 0.0
    %86 = vmatpush1.msra.mxu0 0.0
    %87 = vmatprep.subr.mxu0 0.0
    %88 = vmatpush1.msra.mxu0 0.0
    %89 = vmatprep.subr.mxu0 0.0
    %90 = vmatpush1.msra.mxu0 0.0
    %91 = vmatprep.subr.mxu0 0.0
    %92 = vmatpush1.msra.mxu0 0.0
    %93 = vmatprep.subr.mxu0 0.0
    %94 = vmatpush1.msra.mxu0 0.0
    %95 = vmatprep.subr.mxu0 0.0
    %96 = vmatpush1.msra.mxu0 0.0
    %97 = vmatprep.subr.mxu0 0.0
    %98 = vmatpush1.msra.mxu0 0.0
    %99 = vmatprep.subr.mxu0 0.0
    %100 = vmatpush1.msra.mxu0 %v27
    %101 = vmatprep.subr.mxu0 0.0
    %102 = vmatpush2.msra.mxu0 0.0
    %103 = vmatprep.subr.mxu0 0.0
    %104 = vmatpush2.msra.mxu0 0.0
    %105 = vmatprep.subr.mxu0 0.0
    %106 = vmatpush2.msra.mxu0 0.0
    %107 = vmatprep.subr.mxu0 0.0
    %108 = vmatpush2.msra.mxu0 0.0
    %109 = vmatprep.subr.mxu0 0.0
    %110 = vmatpush2.msra.mxu0 0.0
    %111 = vmatprep.subr.mxu0 0.0
    %112 = vmatpush2.msra.mxu0 0.0
    %113 = vmatprep.subr.mxu0 0.0
    %114 = vmatpush2.msra.mxu0 0.0
    %115 = vmatprep.subr.mxu0 0.0
    %116 = vmatpush2.msra.mxu0 0.0
    %117 = vmatprep.subr.mxu0 0.0
    %118 = vmatpush2.msra.mxu0 0.0
    %119 = vmatprep.subr.mxu0 0.0
    %120 = vmatpush2.msra.mxu0 0.0
    %121 = vmatprep.subr.mxu0 0.0
    %122 = vmatpush2.msra.mxu0 0.0
    %123 = vmatprep.subr.mxu0 0.0
    %124 = vmatpush2.msra.mxu0 0.0
    %125 = vmatprep.subr.mxu0 0.0
    %126 = vmatpush2.msra.mxu0 0.0
    %127 = vmatprep.subr.mxu0 0.0
    %128 = vmatpush2.msra.mxu0 0.0
    %129 = vmatprep.subr.mxu0 0.0
    %130 = vmatpush2.msra.mxu0 0.0
    %131 = vmatprep.subr.mxu0 0.0
    %132 = vmatpush2.msra.mxu0 0.0
    %133 = vmatprep.mubr.f32.mxu0 0.0
    %134 = vmatmul.mubr.f32.gmra.mxu0 %v58
    %v135 = vpop.f32.mrf.mxu0
    %v136 = vadd.f32 %v39, %v135
    %v137 = vpop.f32.mrf.mxu0
    %138 = vmatprep.mubr.f32.mxu0 0.0
    %139 = vmatmul.mubr.f32.gmra.mxu0 %v61
    %v140 = vpop.f32.mrf.mxu0
    %v141 = vadd.f32 %v44, %v140
    %v142 = vpop.f32.mrf.mxu0
    %143 = vmatprep.mubr.f32.mxu0 0.0
    %144 = vmatmul.mubr.f32.gmra.mxu0 %v64
    %v145 = vpop.f32.mrf.mxu0
    %v146 = vadd.f32 %v49, %v145
    %v147 = vpop.f32.mrf.mxu0
    %148 = vmatprep.mubr.f32.mxu0 0.0
    %149 = vmatmul.mubr.f32.gmra.mxu0 %v67
    %v150 = vpop.f32.mrf.mxu0
    %v151 = vadd.f32 %v54, %v150
    %v152 = vpop.f32.mrf.mxu0
    %153 = vdwg.mxu0
    %v154 = vmul.f32 %v136, 0.01
    %v155 = vmul.f32 %v141, 0.01
    %v156 = vmul.f32 %v146, 0.01
    %v157 = vmul.f32 %v151, 0.01
    %v158 = vmax.f32 %v136, %v154
    %v159 = vmax.f32 %v141, %v155
    %v160 = vmax.f32 %v146, %v156
    %v161 = vmax.f32 %v151, %v157
    %v162 = vld [vmem:[%s3] sm:$0xff]
    %v163 = vld [vmem:[%s3 + $0x8] sm:$0xff]
    %v164 = vld [vmem:[%s3 + $0x10] sm:$0xff]
    %v165 = vld [vmem:[%s3 + $0x18] sm:$0xff]
    %v166 = vld [vmem:[%s4] sm:$0xff]
    %v167 = vld [vmem:[%s4 + $0x8] sm:$0xff]
    %v168 = vld [vmem:[%s4 + $0x10] sm:$0xff]
    %v169 = vld [vmem:[%s4 + $0x18] sm:$0xff]
    %171 = vset.pattern.permute.xlu0 0
    %172 = vperm.xlu0 %171, %v166
    %v173 = vpop.permute.xlu0 %172
    %176 = vset.pattern.permute.xlu0 0
    %177 = vperm.xlu0 %176, %v167
    %v178 = vpop.permute.xlu0 %177
    %181 = vset.pattern.permute.xlu0 0
    %182 = vperm.xlu0 %181, %v168
    %v183 = vpop.permute.xlu0 %182
    %186 = vset.pattern.permute.xlu0 0
    %187 = vperm.xlu0 %186, %v169
    %v188 = vpop.permute.xlu0 %187
    %vm190 = vcmask 261120
    %v192 = vsel %vm190, %v162, 0
    %v195 = vsel %vm190, %v163, 0
    %v198 = vsel %vm190, %v164, 0
    %v201 = vsel %vm190, %v165, 0
    %203 = vmatprep.subr.mxu0 0.0
    %204 = vmatpush1.msra.mxu0 0.0
    %205 = vmatprep.subr.mxu0 0.0
    %206 = vmatpush1.msra.mxu0 0.0
    %207 = vmatprep.subr.mxu0 0.0
    %208 = vmatpush1.msra.mxu0 0.0
    %209 = vmatprep.subr.mxu0 0.0
    %210 = vmatpush1.msra.mxu0 0.0
    %211 = vmatprep.subr.mxu0 0.0
    %212 = vmatpush1.msra.mxu0 0.0
    %213 = vmatprep.subr.mxu0 0.0
    %214 = vmatpush1.msra.mxu0 0.0
    %215 = vmatprep.subr.mxu0 0.0
    %216 = vmatpush1.msra.mxu0 0.0
    %217 = vmatprep.subr.mxu0 0.0
    %218 = vmatpush1.msra.mxu0 0.0
    %219 = vmatprep.subr.mxu0 0.0
    %220 = vmatpush1.msra.mxu0 0.0
    %221 = vmatprep.subr.mxu0 0.0
    %222 = vmatpush1.msra.mxu0 0.0
    %223 = vmatprep.subr.mxu0 0.0
    %224 = vmatpush1.msra.mxu0 0.0
    %225 = vmatprep.subr.mxu0 0.0
    %226 = vmatpush1.msra.mxu0 0.0
    %227 = vmatprep.subr.mxu0 0.0
    %228 = vmatpush1.msra.mxu0 %v161
    %229 = vmatprep.subr.mxu0 0.0
    %230 = vmatpush1.msra.mxu0 %v160
    %231 = vmatprep.subr.mxu0 0.0
    %232 = vmatpush1.msra.mxu0 %v159
    %233 = vmatprep.subr.mxu0 0.0
    %234 = vmatpush1.msra.mxu0 %v158
    %235 = vmatprep.subr.mxu0 0.0
    %236 = vmatpush2.msra.mxu0 0.0
    %237 = vmatprep.subr.mxu0 0.0
    %238 = vmatpush2.msra.mxu0 0.0
    %239 = vmatprep.subr.mxu0 0.0
    %240 = vmatpush2.msra.mxu0 0.0
    %241 = vmatprep.subr.mxu0 0.0
    %242 = vmatpush2.msra.mxu0 0.0
    %243 = vmatprep.subr.mxu0 0.0
    %244 = vmatpush2.msra.mxu0 0.0
    %245 = vmatprep.subr.mxu0 0.0
    %246 = vmatpush2.msra.mxu0 0.0
    %247 = vmatprep.subr.mxu0 0.0
    %248 = vmatpush2.msra.mxu0 0.0
    %249 = vmatprep.subr.mxu0 0.0
    %250 = vmatpush2.msra.mxu0 0.0
    %251 = vmatprep.subr.mxu0 0.0
    %252 = vmatpush2.msra.mxu0 0.0
    %253 = vmatprep.subr.mxu0 0.0
    %254 = vmatpush2.msra.mxu0 0.0
    %255 = vmatprep.subr.mxu0 0.0
    %256 = vmatpush2.msra.mxu0 0.0
    %257 = vmatprep.subr.mxu0 0.0
    %258 = vmatpush2.msra.mxu0 0.0
    %259 = vmatprep.subr.mxu0 0.0
    %260 = vmatpush2.msra.mxu0 0.0
    %261 = vmatprep.subr.mxu0 0.0
    %262 = vmatpush2.msra.mxu0 0.0
    %263 = vmatprep.subr.mxu0 0.0
    %264 = vmatpush2.msra.mxu0 0.0
    %265 = vmatprep.subr.mxu0 0.0
    %266 = vmatpush2.msra.mxu0 0.0
    %267 = vmatprep.mubr.f32.mxu0 0.0
    %268 = vmatmul.mubr.f32.gmra.mxu0 %v192
    %v269 = vpop.f32.mrf.mxu0
    %v270 = vadd.f32 %v173, %v269
    %v271 = vpop.f32.mrf.mxu0
    %272 = vmatprep.mubr.f32.mxu0 0.0
    %273 = vmatmul.mubr.f32.gmra.mxu0 %v195
    %v274 = vpop.f32.mrf.mxu0
    %v275 = vadd.f32 %v178, %v274
    %v276 = vpop.f32.mrf.mxu0
    %277 = vmatprep.mubr.f32.mxu0 0.0
    %278 = vmatmul.mubr.f32.gmra.mxu0 %v198
    %v279 = vpop.f32.mrf.mxu0
    %v280 = vadd.f32 %v183, %v279
    %v281 = vpop.f32.mrf.mxu0
    %282 = vmatprep.mubr.f32.mxu0 0.0
    %283 = vmatmul.mubr.f32.gmra.mxu0 %v201
    %v284 = vpop.f32.mrf.mxu0
    %v285 = vadd.f32 %v188, %v284
    %v286 = vpop.f32.mrf.mxu0
    %287 = vdwg.mxu0
    %v288 = vmul.f32 %v270, 0.01
    %v289 = vmul.f32 %v275, 0.01
    %v290 = vmul.f32 %v280, 0.01
    %v291 = vmul.f32 %v285, 0.01
    %v292 = vmax.f32 %v270, %v288
    %v293 = vmax.f32 %v275, %v289
    %v294 = vmax.f32 %v280, %v290
    %v295 = vmax.f32 %v285, %v291
    %v296 = vld [vmem:[%s5] sm:$0xf]
    %v297 = vld [vmem:[%s6] sm:$0xf]
    %299 = vset.pattern.permute.xlu0 0
    %300 = vperm.xlu0 %299, %v297
    %v301 = vpop.permute.xlu0 %300
    %v304 = vsel %vm190, %v296, 0
    %306 = vmatprep.subr.mxu0 0.0
    %307 = vmatpush1.msra.mxu0 0.0
    %308 = vmatprep.subr.mxu0 0.0
    %309 = vmatpush1.msra.mxu0 0.0
    %310 = vmatprep.subr.mxu0 0.0
    %311 = vmatpush1.msra.mxu0 0.0
    %312 = vmatprep.subr.mxu0 0.0
    %313 = vmatpush1.msra.mxu0 0.0
    %314 = vmatprep.subr.mxu0 0.0
    %315 = vmatpush1.msra.mxu0 0.0
    %316 = vmatprep.subr.mxu0 0.0
    %317 = vmatpush1.msra.mxu0 0.0
    %318 = vmatprep.subr.mxu0 0.0
    %319 = vmatpush1.msra.mxu0 0.0
    %320 = vmatprep.subr.mxu0 0.0
    %321 = vmatpush1.msra.mxu0 0.0
    %322 = vmatprep.subr.mxu0 0.0
    %323 = vmatpush1.msra.mxu0 0.0
    %324 = vmatprep.subr.mxu0 0.0
    %325 = vmatpush1.msra.mxu0 0.0
    %326 = vmatprep.subr.mxu0 0.0
    %327 = vmatpush1.msra.mxu0 0.0
    %328 = vmatprep.subr.mxu0 0.0
    %329 = vmatpush1.msra.mxu0 0.0
    %330 = vmatprep.subr.mxu0 0.0
    %331 = vmatpush1.msra.mxu0 %v295
    %332 = vmatprep.subr.mxu0 0.0
    %333 = vmatpush1.msra.mxu0 %v294
    %334 = vmatprep.subr.mxu0 0.0
    %335 = vmatpush1.msra.mxu0 %v293
    %336 = vmatprep.subr.mxu0 0.0
    %337 = vmatpush1.msra.mxu0 %v292
    %338 = vmatprep.subr.mxu0 0.0
    %339 = vmatpush2.msra.mxu0 0.0
    %340 = vmatprep.subr.mxu0 0.0
    %341 = vmatpush2.msra.mxu0 0.0
    %342 = vmatprep.subr.mxu0 0.0
    %343 = vmatpush2.msra.mxu0 0.0
    %344 = vmatprep.subr.mxu0 0.0
    %345 = vmatpush2.msra.mxu0 0.0
    %346 = vmatprep.subr.mxu0 0.0
    %347 = vmatpush2.msra.mxu0 0.0
    %348 = vmatprep.subr.mxu0 0.0
    %349 = vmatpush2.msra.mxu0 0.0
    %350 = vmatprep.subr.mxu0 0.0
    %351 = vmatpush2.msra.mxu0 0.0
    %352 = vmatprep.subr.mxu0 0.0
    %353 = vmatpush2.msra.mxu0 0.0
    %354 = vmatprep.subr.mxu0 0.0
    %355 = vmatpush2.msra.mxu0 0.0
    %356 = vmatprep.subr.mxu0 0.0
    %357 = vmatpush2.msra.mxu0 0.0
    %358 = vmatprep.subr.mxu0 0.0
    %359 = vmatpush2.msra.mxu0 0.0
    %360 = vmatprep.subr.mxu0 0.0
    %361 = vmatpush2.msra.mxu0 0.0
    %362 = vmatprep.subr.mxu0 0.0
    %363 = vmatpush2.msra.mxu0 0.0
    %364 = vmatprep.subr.mxu0 0.0
    %365 = vmatpush2.msra.mxu0 0.0
    %366 = vmatprep.subr.mxu0 0.0
    %367 = vmatpush2.msra.mxu0 0.0
    %368 = vmatprep.subr.mxu0 0.0
    %369 = vmatpush2.msra.mxu0 0.0
    %370 = vmatprep.mubr.f32.mxu0 0.0
    %371 = vmatmul.mubr.f32.gmra.mxu0 %v304
    %v372 = vpop.f32.mrf.mxu0
    %v373 = vadd.f32 %v301, %v372
    %v374 = vpop.f32.mrf.mxu0
    %375 = vdwg.mxu0
    %vm376 = vcmask 60416
    %377 = vst.msk [vmem:[#allocation2] sm:$0xf] %vm376, %v373
    // Predicated region
    $region30: #{tpu_custom_call.1} parent=1 // pred_check
      _
    $region31: #{tpu_custom_call.1} parent=1 // pred_check_branch
      %379 = sbr.rel (0) target = $region33
    $region32: #{tpu_custom_call.1} parent=1 // pred_region
      %s381 = ssub.s32 64, 64
      %382 = vsyncadd [#allocation3], %s381
      %s384 = sshll.u32 [#allocation2], 4
      %s385 = int_to_ptr.vmem [resolvable:$true] %s384
      %387 = dma.vmem_to_hbm [thread:$0]  %s385, 64, %s7, [#allocation3]
    $region33: #{tpu_custom_call.1} parent=1 // pred_fallthru
      _
    // Predicated region
    $region34: #{tpu_custom_call.1} parent=1 // pred_check
      _
    $region35: #{tpu_custom_call.1} parent=1 // pred_check_branch
      %389 = sbr.rel (0) target = $region37
    $region36: #{tpu_custom_call.1} parent=1 // pred_region
      %390 = dma.done [#allocation3], 64
    $region37: #{tpu_custom_call.1} parent=1 // pred_fallthru
      _
    %391 = vsyncpa [#allocation3], 1

</llo_original>
